<compile_context>
chip_gen: v7x
topology: tpu7x:2x2x1
jax: 0.10.0
libtpu: 0.0.40
codegen_flags: <defaults>
</compile_context>

<pallas_src>
import functools

import jax
import jax.numpy as jnp
from jax.experimental import pallas as pl
from jax.experimental.pallas import tpu as pltpu


# --------------------------------------------------------------------------- #
# Pallas kernel: for one (batch, spatial-tile) block compute
#   a    = relu(Wg^T @ g + Wx^T @ x + b)          (Ci, ts)
#   psi  = sigmoid(sum_i wp_i * a_i + bp)         (1,  ts)
#   out  = x * psi                                (Cx, ts)
# Channels sit on sublanes, spatial on lanes -> lane-dense loads and stores.
# --------------------------------------------------------------------------- #
def _attn_gate_kernel(g_ref, x_ref, wg_ref, wx_ref, b_ref, wp_ref, bp_ref, o_ref):
    g = g_ref[0].astype(jnp.float32)                      # (Cg, ts)
    x = x_ref[0].astype(jnp.float32)                      # (Cx, ts)

    # fused 1x1 convs (+ folded BN) on gating signal and x, single combined bias
    a = jnp.dot(wg_ref[...], g, preferred_element_type=jnp.float32)
    a = a + jnp.dot(wx_ref[...], x, preferred_element_type=jnp.float32)
    a = jnp.maximum(a + b_ref[...], 0.0)                  # (Ci, ts)

    # psi head: 1x1 conv Ci -> 1 as a sublane reduction (XLU), bias from SMEM
    logit = jnp.sum(a * wp_ref[...], axis=0, keepdims=True) + bp_ref[0]   # (1, ts)
    psi = jax.nn.sigmoid(logit)

    # gate x (psi broadcast over the channel/sublane axis); lane-dense store
    o_ref[0] = (x * psi).astype(o_ref.dtype)


# --------------------------------------------------------------------------- #
# Tiling helpers
# --------------------------------------------------------------------------- #
def _round_up(a, b):
    return (a + b - 1) // b * b


def _choose_spatial_tile(s, cg, cx, itemsize, target,
                         block_vmem_budget=20 * 1024 * 1024):
    """Largest multiple-of-128 spatial tile <= target whose double-buffered
    (g, x, out) blocks fit a conservative VMEM budget (headroom on v7x 64 MiB)."""
    bytes_per_col = 2 * (cg + 2 * cx) * itemsize          # double-buffered in + out
    vmem_cap = max(block_vmem_budget // bytes_per_col, 128)
    ts = min(target, _round_up(s, 128), vmem_cap)
    return max(128, ts // 128 * 128)


def _attn_gate_pallas(g3, x3, wg_t, wx_t, b_gx, wp, bp, *, ts):
    """g3: (B, Cg, S), x3: (B, Cx, S) with S a multiple of ts.  BN-folded weights:
       wg_t: (Ci, Cg), wx_t: (Ci, Cx), b_gx: (Ci, 1), wp: (Ci, 1), bp: (1,).
       Returns (B, Cx, S)."""
    B, cg, S = g3.shape
    _, cx, _ = x3.shape
    ci = wg_t.shape[0]
    assert S % ts == 0  # guaranteed by the wrapper (pads ragged spatial sizes)

    itemsize = jnp.dtype(x3.dtype).itemsize
    block_bytes = 2 * ts * (cg + 2 * cx) * itemsize            # double-buffered tiles
    param_bytes = 8 * (ci * (cg + cx) + 2 * ci + 1)            # small f32 weights x2
    vmem_limit = int(min(max(block_bytes + param_bytes + (2 << 20), 32 << 20),
                         48 << 20))

    const = lambda shape: pl.BlockSpec(shape, lambda b, s: (0, 0))

    return pl.pallas_call(
        _attn_gate_kernel,
        out_shape=jax.ShapeDtypeStruct((B, cx, S), x3.dtype),
        grid_spec=pltpu.PrefetchScalarGridSpec(
            num_scalar_prefetch=0,
            grid=(B, S // ts),
            in_specs=[
                pl.BlockSpec((1, cg, ts), lambda b, s: (b, 0, s)),   # g tile
                pl.BlockSpec((1, cx, ts), lambda b, s: (b, 0, s)),   # x tile
                const((ci, cg)),                                     # Wg^T (BN-folded)
                const((ci, cx)),                                     # Wx^T (BN-folded)
                const((ci, 1)),                                      # bg + bx (folded)
                const((ci, 1)),                                      # Wpsi  (BN-folded)
                pl.BlockSpec(memory_space=pltpu.MemorySpace.SMEM),   # bpsi scalar
            ],
            out_specs=pl.BlockSpec((1, cx, ts), lambda b, s: (b, 0, s)),
        ),
        compiler_params=pltpu.CompilerParams(
            dimension_semantics=("parallel", "parallel"),
            vmem_limit_bytes=vmem_limit,
        ),
    )(g3, x3, wg_t, wx_t, b_gx, wp, bp)


@functools.partial(jax.jit, static_argnames=("max_spatial_tile",))
def aggregated_attention(g_nchw, x_nchw, params, max_spatial_tile=2048):
    """g: (B, Cg, H, W), x: (B, Cx, H, W)  ->  (B, Cx, H, W).
       No layout transposes: NCHW is flattened to (B, C, H*W) so channels map to
       sublanes and spatial to lanes."""
    wg_t, wx_t, b_gx, wp, bp = params
    B, cg, H, W = g_nchw.shape
    _, cx, _, _ = x_nchw.shape
    S = H * W

    ts = _choose_spatial_tile(S, cg, cx, jnp.dtype(x_nchw.dtype).itemsize,
                              target=max_spatial_tile)
    s_pad = _round_up(S, ts)

    g3 = g_nchw.reshape(B, cg, S)
    x3 = x_nchw.reshape(B, cx, S)
    if s_pad != S:   # ragged spatial size: zero-pad to a tile multiple, slice off after
        g3 = jnp.pad(g3, ((0, 0), (0, 0), (0, s_pad - S)))
        x3 = jnp.pad(x3, ((0, 0), (0, 0), (0, s_pad - S)))

    out3 = _attn_gate_pallas(g3, x3, wg_t, wx_t, b_gx, wp, bp, ts=ts)
    return out3[:, :, :S].reshape(B, cx, H, W)


# --------------------------------------------------------------------------- #
# Parameter construction + BN folding (plain JAX glue)
# --------------------------------------------------------------------------- #
def _fold_conv_bn(w, b, gamma, beta, mean, var, eps=1e-5):
    """Fold inference-mode BatchNorm into a 1x1 conv given as a (Cin, Cout) matrix."""
    scale = gamma / jnp.sqrt(var + eps)            # (Cout,)
    w_eff = w * scale[None, :]                     # (Cin, Cout)
    b_eff = (b - mean) * scale + beta              # (Cout,)
    return w_eff, b_eff


def make_params(key, in_channels, gating_channels, inter_channels):
    ks = jax.random.split(key, 6)
    wg = jax.random.normal(ks[0], (gating_channels, inter_channels), jnp.float32) * 0.2
    bg = jax.random.normal(ks[1], (inter_channels,), jnp.float32) * 0.1
    wx = jax.random.normal(ks[2], (in_channels, inter_channels), jnp.float32) * 0.2
    bx = jax.random.normal(ks[3], (inter_channels,), jnp.float32) * 0.1
    wp = jax.random.normal(ks[4], (inter_channels, 1), jnp.float32) * 0.2
    bp = jax.random.normal(ks[5], (1,), jnp.float32) * 0.1

    def bn(c, off):   # deterministic, non-trivial inference-mode BN params
        gamma = 1.0 + 0.05 * jnp.arange(c, dtype=jnp.float32)
        beta = 0.02 * jnp.arange(c, dtype=jnp.float32) - 0.01 * off
        mean = 0.01 * jnp.arange(c, dtype=jnp.float32)
        var = 1.0 + 0.03 * jnp.arange(c, dtype=jnp.float32)
        return gamma, beta, mean, var

    wg_e, bg_e = _fold_conv_bn(wg, bg, *bn(inter_channels, 1))   # (Cg, Ci), (Ci,)
    wx_e, bx_e = _fold_conv_bn(wx, bx, *bn(inter_channels, 2))   # (Cx, Ci), (Ci,)
    wp_e, bp_e = _fold_conv_bn(wp, bp, *bn(1, 3))                # (Ci, 1),  (1,)

    wg_t = jnp.transpose(wg_e)                    # (Ci, Cg)
    wx_t = jnp.transpose(wx_e)                    # (Ci, Cx)
    b_gx = (bg_e + bx_e)[:, None]                 # (Ci, 1) combined projection bias
    return wg_t, wx_t, b_gx, wp_e, bp_e


def aggregated_attention_ref(g_nchw, x_nchw, params):
    """Pure-JAX reference mirroring the PyTorch forward (BN folded)."""
    wg_t, wx_t, b_gx, wp, bp = params
    B, cg, H, W = g_nchw.shape
    cx = x_nchw.shape[1]
    g = g_nchw.reshape(B, cg, H * W).astype(jnp.float32)
    x = x_nchw.reshape(B, cx, H * W).astype(jnp.float32)
    hi = jax.lax.Precision.HIGHEST
    a = (jnp.einsum("ic,bcs->bis", wg_t, g, precision=hi)
         + jnp.einsum("ic,bcs->bis", wx_t, x, precision=hi)
         + b_gx[None])
    a = jnp.maximum(a, 0.0)
    logit = jnp.sum(a * wp[None], axis=1, keepdims=True) + bp[0]
    psi = jax.nn.sigmoid(logit)
    out = x * psi
    return out.reshape(B, cx, H, W).astype(x_nchw.dtype)


if __name__ == "__main__":
    # Shapes consistent with UpConv: the attention gate uses in = gating = C_out
    # channels and inter = C_out // 2.
    B, C_out, H, Wd = 2, 8, 16, 16
    Cg = Cx = C_out
    Ci = C_out // 2

    key = jax.random.PRNGKey(0)
    k_g, k_x, k_p = jax.random.split(key, 3)
    g = jax.random.normal(k_g, (B, Cg, H, Wd), jnp.float32)
    x = jax.random.normal(k_x, (B, Cx, H, Wd), jnp.float32)
    params = make_params(k_p, Cx, Cg, Ci)

    out = jax.block_until_ready(aggregated_attention(g, x, params))
    ref = jax.block_until_ready(aggregated_attention_ref(g, x, params))
    assert out.shape == (B, Cx, H, Wd)
    assert jnp.allclose(out, ref, atol=1e-5, rtol=1e-5), "f32 mismatch vs reference"

    # bf16 I/O path (kernel is HBM-bound; halving bytes moved ~doubles throughput).
    out_bf16 = jax.block_until_ready(
        aggregated_attention(g.astype(jnp.bfloat16), x.astype(jnp.bfloat16), params))
    assert out_bf16.dtype == jnp.bfloat16
    assert jnp.allclose(out_bf16.astype(jnp.float32), ref, atol=1e-1, rtol=1e-1), \
        "bf16 mismatch vs reference"

    print("KERNEL_OK")
</pallas_src>

<mosaic_0001>
module attributes {stable_mosaic.version = 11 : i64} {
  func.func @_attn_gate_kernel(%arg0: i32, %arg1: i32, %arg2: memref<1x8x256xf32, #tpu.memory_space<vmem>>, %arg3: memref<1x8x256xf32, #tpu.memory_space<vmem>>, %arg4: memref<4x8xf32, #tpu.memory_space<vmem>>, %arg5: memref<4x8xf32, #tpu.memory_space<vmem>>, %arg6: memref<4x1xf32, #tpu.memory_space<vmem>>, %arg7: memref<4x1xf32, #tpu.memory_space<vmem>>, %arg8: memref<1xf32, #tpu.memory_space<smem>>, %arg9: memref<1x8x256xf32, #tpu.memory_space<vmem>>) attributes {dimension_semantics = [#tpu.dimension_semantics<parallel>, #tpu.dimension_semantics<parallel>], iteration_bounds = array<i64: 2, 1>, scalar_prefetch = 0 : i64, scratch_operands = 0 : i64, tpu.core_type = #tpu.core_type<tc>, window_params = [{transform_indices = @transform_0, window_bounds = array<i64: 1, 8, 256>}, {transform_indices = @transform_1, window_bounds = array<i64: 1, 8, 256>}, {pipeline_mode = #tpu.pipeline_mode<synchronous>, transform_indices = @transform_2, window_bounds = array<i64: 4, 8>}, {pipeline_mode = #tpu.pipeline_mode<synchronous>, transform_indices = @transform_3, window_bounds = array<i64: 4, 8>}, {pipeline_mode = #tpu.pipeline_mode<synchronous>, transform_indices = @transform_4, window_bounds = array<i64: 4, 1>}, {pipeline_mode = #tpu.pipeline_mode<synchronous>, transform_indices = @transform_5, window_bounds = array<i64: 4, 1>}, {transform_indices = @transform_6, window_bounds = array<i64: 1>}, {transform_indices = @transform_7, window_bounds = array<i64: 1, 8, 256>}]} {
    %c0 = arith.constant 0 : index
    %c0_0 = arith.constant 0 : index
    %c0_1 = arith.constant 0 : index
    %0 = vector.load %arg2[%c0, %c0_0, %c0_1] : memref<1x8x256xf32, #tpu.memory_space<vmem>>, vector<1x8x256xf32>
    %1 = vector.shape_cast %0 : vector<1x8x256xf32> to vector<8x256xf32>
    %c0_2 = arith.constant 0 : index
    %c0_3 = arith.constant 0 : index
    %c0_4 = arith.constant 0 : index
    %2 = vector.load %arg3[%c0_2, %c0_3, %c0_4] : memref<1x8x256xf32, #tpu.memory_space<vmem>>, vector<1x8x256xf32>
    %3 = vector.shape_cast %2 : vector<1x8x256xf32> to vector<8x256xf32>
    %c0_5 = arith.constant 0 : index
    %c0_6 = arith.constant 0 : index
    %4 = vector.load %arg4[%c0_5, %c0_6] : memref<4x8xf32, #tpu.memory_space<vmem>>, vector<4x8xf32>
    %cst = arith.constant dense<0.000000e+00> : vector<4x256xf32>
    %5 = tpu.matmul %4, %1, %cst {dimension_numbers = #tpu.dot_dimension_numbers<[1], [0], [0], [1], [0, 0, 1, 1], [], []>} : vector<4x8xf32>, vector<8x256xf32>, vector<4x256xf32> -> vector<4x256xf32>
    %c0_7 = arith.constant 0 : index
    %c0_8 = arith.constant 0 : index
    %6 = vector.load %arg5[%c0_7, %c0_8] : memref<4x8xf32, #tpu.memory_space<vmem>>, vector<4x8xf32>
    %cst_9 = arith.constant dense<0.000000e+00> : vector<4x256xf32>
    %7 = tpu.matmul %6, %3, %cst_9 {dimension_numbers = #tpu.dot_dimension_numbers<[1], [0], [0], [1], [0, 0, 1, 1], [], []>} : vector<4x8xf32>, vector<8x256xf32>, vector<4x256xf32> -> vector<4x256xf32>
    %8 = arith.addf %5, %7 : vector<4x256xf32>
    %c0_10 = arith.constant 0 : index
    %c0_11 = arith.constant 0 : index
    %9 = vector.load %arg6[%c0_10, %c0_11] : memref<4x1xf32, #tpu.memory_space<vmem>>, vector<4x1xf32>
    %10 = vector.broadcast %9 : vector<4x1xf32> to vector<4x256xf32>
    %11 = arith.addf %8, %10 : vector<4x256xf32>
    %cst_12 = arith.constant 0.000000e+00 : f32
    %12 = vector.broadcast %cst_12 : f32 to vector<4x256xf32>
    %13 = arith.maximumf %11, %12 : vector<4x256xf32>
    %c0_13 = arith.constant 0 : index
    %c0_14 = arith.constant 0 : index
    %14 = vector.load %arg7[%c0_13, %c0_14] : memref<4x1xf32, #tpu.memory_space<vmem>>, vector<4x1xf32>
    %15 = vector.broadcast %14 : vector<4x1xf32> to vector<4x256xf32>
    %16 = arith.mulf %13, %15 : vector<4x256xf32>
    %cst_15 = arith.constant dense<0.000000e+00> : vector<256xf32>
    %17 = vector.multi_reduction <add>, %16, %cst_15 [0] : vector<4x256xf32> to vector<256xf32>
    %18 = vector.shape_cast %17 : vector<256xf32> to vector<1x256xf32>
    %c0_16 = arith.constant 0 : index
    %19 = memref.load %arg8[%c0_16] : memref<1xf32, #tpu.memory_space<smem>>
    %20 = vector.broadcast %19 : f32 to vector<1x256xf32>
    %21 = arith.addf %18, %20 : vector<1x256xf32>
    %22 = arith.negf %21 : vector<1x256xf32>
    %23 = math.exp %22 : vector<1x256xf32>
    %cst_17 = arith.constant 1.000000e+00 : f32
    %24 = vector.broadcast %cst_17 : f32 to vector<1x256xf32>
    %25 = arith.addf %24, %23 : vector<1x256xf32>
    %26 = arith.divf %24, %25 : vector<1x256xf32>
    %27 = vector.broadcast %26 : vector<1x256xf32> to vector<8x256xf32>
    %28 = arith.mulf %3, %27 : vector<8x256xf32>
    %c0_18 = arith.constant 0 : index
    %c0_19 = arith.constant 0 : index
    %c0_20 = arith.constant 0 : index
    %29 = vector.load %arg9[%c0_18, %c0_19, %c0_20] : memref<1x8x256xf32, #tpu.memory_space<vmem>>, vector<1x8x256xf32>
    %30 = vector.shape_cast %29 : vector<1x8x256xf32> to vector<8x256xf32>
    %31 = vector.shape_cast %28 : vector<8x256xf32> to vector<1x8x256xf32>
    tpu.vector_store %arg9[%c0_18, %c0_19, %c0_20], %31 {strides = array<i32>} : memref<1x8x256xf32, #tpu.memory_space<vmem>>, vector<1x8x256xf32>,
    return
  }
  func.func @transform_0(%arg0: i32, %arg1: i32) -> (i32, i32, i32) {
    %c0_i32 = arith.constant 0 : i32
    %c0_i32_0 = arith.constant 0 : i32
    return %arg0, %c0_i32, %arg1 : i32, i32, i32
  }
  func.func @transform_1(%arg0: i32, %arg1: i32) -> (i32, i32, i32) {
    %c0_i32 = arith.constant 0 : i32
    %c0_i32_0 = arith.constant 0 : i32
    return %arg0, %c0_i32, %arg1 : i32, i32, i32
  }
  func.func @transform_2(%arg0: i32, %arg1: i32) -> (i32, i32) {
    %c0_i32 = arith.constant 0 : i32
    %c0_i32_0 = arith.constant 0 : i32
    %c0_i32_1 = arith.constant 0 : i32
    return %c0_i32, %c0_i32_0 : i32, i32
  }
  func.func @transform_3(%arg0: i32, %arg1: i32) -> (i32, i32) {
    %c0_i32 = arith.constant 0 : i32
    %c0_i32_0 = arith.constant 0 : i32
    %c0_i32_1 = arith.constant 0 : i32
    return %c0_i32, %c0_i32_0 : i32, i32
  }
  func.func @transform_4(%arg0: i32, %arg1: i32) -> (i32, i32) {
    %c0_i32 = arith.constant 0 : i32
    %c0_i32_0 = arith.constant 0 : i32
    %c0_i32_1 = arith.constant 0 : i32
    return %c0_i32, %c0_i32_0 : i32, i32
  }
  func.func @transform_5(%arg0: i32, %arg1: i32) -> (i32, i32) {
    %c0_i32 = arith.constant 0 : i32
    %c0_i32_0 = arith.constant 0 : i32
    %c0_i32_1 = arith.constant 0 : i32
    return %c0_i32, %c0_i32_0 : i32, i32
  }
  func.func @transform_6(%arg0: i32, %arg1: i32) -> i32 {
    %c0_i32 = arith.constant 0 : i32
    %c0_i32_0 = arith.constant 0 : i32
    return %c0_i32 : i32
  }
  func.func @transform_7(%arg0: i32, %arg1: i32) -> (i32, i32, i32) {
    %c0_i32 = arith.constant 0 : i32
    %c0_i32_0 = arith.constant 0 : i32
    return %arg0, %c0_i32, %arg1 : i32, i32, i32
  }
}

</mosaic_0001>

<llo_original>
// kernel: aggregated_attention.1
$region0: #{aggregated_attention.1}
  #allocation0 [shape = 'u32[]', space=smem, size = 0x4, offset = 0x4, fixed_abs, tag = 'smem constant byte address 0x4 - core index']
  #allocation1 [shape = 'u32[144,128]{1,0:T(1,128)}', space=vmem, size = 0x12000, scoped, tag = 'internal scratch']
  #allocation2 [shape = 'f32[1]{0:T(128)S(6)}', space=smem, size = 0x200, scoped, tag = 'scoped memory for aggregated_attention.1']
  %s0 = inlined_call_operand.vmem [shape: f32[2,8,256], index: 0, kind: input, shape index: {}]
  %s1 = inlined_call_operand.vmem [shape: f32[2,8,256], index: 1, kind: input, shape index: {}]
  %s2 = inlined_call_operand.vmem [shape: f32[4,8], index: 2, kind: input, shape index: {}]
  %s3 = inlined_call_operand.vmem [shape: f32[4,8], index: 3, kind: input, shape index: {}]
  %s4 = inlined_call_operand.vmem [shape: f32[4,1], index: 4, kind: input, shape index: {}]
  %s5 = inlined_call_operand.vmem [shape: f32[4,1], index: 5, kind: input, shape index: {}]
  %s6 = inlined_call_operand.<no memory space> [shape: f32[1], index: 6, kind: input, shape index: {}]
  %s7 = inlined_call_operand.vmem [shape: f32[2,8,256], index: 7, kind: output, shape index: {}]
  %s8 = sld [smem:[#allocation0]]
  $region61: #{aggregated_attention.1} parent=0
    _
  %s10 = ssub.s32 1, %s8
  %s11 = scalar_select 0, %s10, %s8
  %12 = sst [smem:[#allocation2]] %s6
  loop: start=0, step=1, limit=4
  $region2: #{aggregated_attention.1} parent=0 // loop_pre_header
    _
  $region3: #{aggregated_attention.1} parent=0 // loop_header
    %s14 = sphi 0, %s18
    %p15 = scmp.ge.s32.totalorder %s14, 4
    %s21 = sphi 0, %s33
    %s22 = sphi 0, %s29
    %s23 = sphi 0, %s21
    %s24 = sphi 0, %s22
    %s25 = sphi 0, %s23
    %s26 = sphi 0, %s24
    %s38 = sphi 0, %s40
    %s41 = sphi 0, %s38
    %s42 = sphi 0, %s41
    %s58 = sphi 0, %s42
    %s66 = sphi 0, %s68
    %s69 = sphi 0, %s66
    %s70 = sphi 0, %s69
    %s86 = sphi 0, %s70
    %s90 = sphi 0, %s90
    %s92 = sphi 0, %s90
    %s93 = sphi 0, %s92
    %s107 = sphi 0, %s93
    %s111 = sphi 0, %s111
    %s113 = sphi 0, %s111
    %s114 = sphi 0, %s113
    %s128 = sphi 0, %s114
    %s132 = sphi 0, %s132
    %s134 = sphi 0, %s132
    %s135 = sphi 0, %s134
    %s149 = sphi 0, %s135
    %s153 = sphi 0, %s153
    %s155 = sphi 0, %s153
    %s156 = sphi 0, %s155
    %s170 = sphi 0, %s156
    %s174 = sphi 0, %s174
    %s176 = sphi 0, %s174
    %s177 = sphi 0, %s176
    %s191 = sphi 0, %s177
    %s199 = sphi 0, %s201
    %s202 = sphi 0, %s199
    %s203 = sphi 0, %s202
    %s219 = sphi 0, %s203
  $region4: #{aggregated_attention.1} parent=0 // loop_header_branch
    %17 = sbr.rel (%p15) target = $region8
  $region5: #{aggregated_attention.1} parent=0 // loop_body
    %s19 = ssub.s32 %s14, 1
    %s20 = ssub.s32 %s14, 2
    %s27 = sadd.s32 1, %s22
    %p28 = scmp.ge.s32.totalorder %s27, 1
    %s29 = scalar_select %p28, 0, %s27
    %s30 = sadd.s32 1, %s21
    %s31 = scalar_select %p28, %s30, %s21
    %p32 = scmp.ge.s32.totalorder %s31, 2
    %s33 = scalar_select %p32, 0, %s31
    %s34 = ssub.s32 %s21, %s33
    %s35 = ssub.s32 %s22, %s29
    %s36 = sor.u32 %s34, %s35
    %p37 = scmp.eq.s32.totalorder %s36, 0
    %s39 = sadd.s32 %s38, 1
    %s40 = scalar_select %p37, %s38, %s39
    %p43 = pneg %p37
    %p44 = scmp.eq.s32.totalorder %s14, 1
    %p45 = por %p43, %p44
    %p46 = scmp.ne.s32.totalorder %s38, %s41
    %p47 = scmp.eq.s32.totalorder %s14, 0
    %p48 = por %p46, %p47
    %p49 = scmp.ne.s32.totalorder %s38, %s41
    %p50 = scmp.eq.s32.totalorder %s19, 1
    %p51 = por %p49, %p50
    %p52 = scmp.ne.s32.totalorder %s41, %s42
    %p53 = scmp.eq.s32.totalorder %s19, 0
    %p54 = por %p52, %p53
    %p55 = scmp.ne.s32.totalorder %s41, %s42
    %p56 = scmp.eq.s32.totalorder %s20, 1
    %p57 = por %p55, %p56
    %p59 = scmp.ne.s32.totalorder %s42, %s58
    %p60 = scmp.eq.s32.totalorder %s20, 0
    %p61 = por %p59, %p60
    %s62 = ssub.s32 %s21, %s33
    %s63 = ssub.s32 %s22, %s29
    %s64 = sor.u32 %s62, %s63
    %p65 = scmp.eq.s32.totalorder %s64, 0
    %s67 = sadd.s32 %s66, 1
    %s68 = scalar_select %p65, %s66, %s67
    %p71 = pneg %p65
    %p72 = scmp.eq.s32.totalorder %s14, 1
    %p73 = por %p71, %p72
    %p74 = scmp.ne.s32.totalorder %s66, %s69
    %p75 = scmp.eq.s32.totalorder %s14, 0
    %p76 = por %p74, %p75
    %p77 = scmp.ne.s32.totalorder %s66, %s69
    %p78 = scmp.eq.s32.totalorder %s19, 1
    %p79 = por %p77, %p78
    %p80 = scmp.ne.s32.totalorder %s69, %s70
    %p81 = scmp.eq.s32.totalorder %s19, 0
    %p82 = por %p80, %p81
    %p83 = scmp.ne.s32.totalorder %s69, %s70
    %p84 = scmp.eq.s32.totalorder %s20, 1
    %p85 = por %p83, %p84
    %p87 = scmp.ne.s32.totalorder %s70, %s86
    %p88 = scmp.eq.s32.totalorder %s20, 0
    %p89 = por %p87, %p88
    %s91 = sadd.s32 %s90, 1
    %p94 = scmp.eq.s32.totalorder %s14, 1
    %p95 = scmp.ne.s32.totalorder %s90, %s92
    %p96 = scmp.eq.s32.totalorder %s14, 0
    %p97 = por %p95, %p96
    %p98 = scmp.ne.s32.totalorder %s90, %s92
    %p99 = scmp.eq.s32.totalorder %s19, 1
    %p100 = por %p98, %p99
    %p101 = scmp.ne.s32.totalorder %s92, %s93
    %p102 = scmp.eq.s32.totalorder %s19, 0
    %p103 = por %p101, %p102
    %p104 = scmp.ne.s32.totalorder %s92, %s93
    %p105 = scmp.eq.s32.totalorder %s20, 1
    %p106 = por %p104, %p105
    %p108 = scmp.ne.s32.totalorder %s93, %s107
    %p109 = scmp.eq.s32.totalorder %s20, 0
    %p110 = por %p108, %p109
    %s112 = sadd.s32 %s111, 1
    %p115 = scmp.eq.s32.totalorder %s14, 1
    %p116 = scmp.ne.s32.totalorder %s111, %s113
    %p117 = scmp.eq.s32.totalorder %s14, 0
    %p118 = por %p116, %p117
    %p119 = scmp.ne.s32.totalorder %s111, %s113
    %p120 = scmp.eq.s32.totalorder %s19, 1
    %p121 = por %p119, %p120
    %p122 = scmp.ne.s32.totalorder %s113, %s114
    %p123 = scmp.eq.s32.totalorder %s19, 0
    %p124 = por %p122, %p123
    %p125 = scmp.ne.s32.totalorder %s113, %s114
    %p126 = scmp.eq.s32.totalorder %s20, 1
    %p127 = por %p125, %p126
    %p129 = scmp.ne.s32.totalorder %s114, %s128
    %p130 = scmp.eq.s32.totalorder %s20, 0
    %p131 = por %p129, %p130
    %s133 = sadd.s32 %s132, 1
    %p136 = scmp.eq.s32.totalorder %s14, 1
    %p137 = scmp.ne.s32.totalorder %s132, %s134
    %p138 = scmp.eq.s32.totalorder %s14, 0
    %p139 = por %p137, %p138
    %p140 = scmp.ne.s32.totalorder %s132, %s134
    %p141 = scmp.eq.s32.totalorder %s19, 1
    %p142 = por %p140, %p141
    %p143 = scmp.ne.s32.totalorder %s134, %s135
    %p144 = scmp.eq.s32.totalorder %s19, 0
    %p145 = por %p143, %p144
    %p146 = scmp.ne.s32.totalorder %s134, %s135
    %p147 = scmp.eq.s32.totalorder %s20, 1
    %p148 = por %p146, %p147
    %p150 = scmp.ne.s32.totalorder %s135, %s149
    %p151 = scmp.eq.s32.totalorder %s20, 0
    %p152 = por %p150, %p151
    %s154 = sadd.s32 %s153, 1
    %p157 = scmp.eq.s32.totalorder %s14, 1
    %p158 = scmp.ne.s32.totalorder %s153, %s155
    %p159 = scmp.eq.s32.totalorder %s14, 0
    %p160 = por %p158, %p159
    %p161 = scmp.ne.s32.totalorder %s153, %s155
    %p162 = scmp.eq.s32.totalorder %s19, 1
    %p163 = por %p161, %p162
    %p164 = scmp.ne.s32.totalorder %s155, %s156
    %p165 = scmp.eq.s32.totalorder %s19, 0
    %p166 = por %p164, %p165
    %p167 = scmp.ne.s32.totalorder %s155, %s156
    %p168 = scmp.eq.s32.totalorder %s20, 1
    %p169 = por %p167, %p168
    %p171 = scmp.ne.s32.totalorder %s156, %s170
    %p172 = scmp.eq.s32.totalorder %s20, 0
    %p173 = por %p171, %p172
    %s175 = sadd.s32 %s174, 1
    %p178 = scmp.eq.s32.totalorder %s14, 1
    %p179 = scmp.ne.s32.totalorder %s174, %s176
    %p180 = scmp.eq.s32.totalorder %s14, 0
    %p181 = por %p179, %p180
    %p182 = scmp.ne.s32.totalorder %s174, %s176
    %p183 = scmp.eq.s32.totalorder %s19, 1
    %p184 = por %p182, %p183
    %p185 = scmp.ne.s32.totalorder %s176, %s177
    %p186 = scmp.eq.s32.totalorder %s19, 0
    %p187 = por %p185, %p186
    %p188 = scmp.ne.s32.totalorder %s176, %s177
    %p189 = scmp.eq.s32.totalorder %s20, 1
    %p190 = por %p188, %p189
    %p192 = scmp.ne.s32.totalorder %s177, %s191
    %p193 = scmp.eq.s32.totalorder %s20, 0
    %p194 = por %p192, %p193
    %s195 = ssub.s32 %s21, %s33
    %s196 = ssub.s32 %s22, %s29
    %s197 = sor.u32 %s195, %s196
    %p198 = scmp.eq.s32.totalorder %s197, 0
    %s200 = sadd.s32 %s199, 1
    %s201 = scalar_select %p198, %s199, %s200
    %p204 = pneg %p198
    %p205 = scmp.eq.s32.totalorder %s14, 1
    %p206 = por %p204, %p205
    %p207 = scmp.ne.s32.totalorder %s199, %s202
    %p208 = scmp.eq.s32.totalorder %s14, 0
    %p209 = por %p207, %p208
    %p210 = scmp.ne.s32.totalorder %s199, %s202
    %p211 = scmp.eq.s32.totalorder %s19, 1
    %p212 = por %p210, %p211
    %p213 = scmp.ne.s32.totalorder %s202, %s203
    %p214 = scmp.eq.s32.totalorder %s19, 0
    %p215 = por %p213, %p214
    %p216 = scmp.ne.s32.totalorder %s202, %s203
    %p217 = scmp.eq.s32.totalorder %s20, 1
    %p218 = por %p216, %p217
    %p220 = scmp.ne.s32.totalorder %s203, %s219
    %p221 = scmp.eq.s32.totalorder %s20, 0
    %p222 = por %p220, %p221
    %p223 = scmp.le.s32.totalorder 1, %s14
    %p224 = scmp.lt.s32.totalorder %s14, 3
    %p225 = pnand %p223, %p224
    %p226 = pneg %p225
    // Predicated region
    $region9: #{aggregated_attention.1} parent=5 // pred_check
      _
    $region10: #{aggregated_attention.1} parent=5 // pred_check_branch
      %228 = sbr.rel (%p225) target = $region12
    $region11: #{aggregated_attention.1} parent=5 // pred_region
      %s229 = ssub.s32 %s14, 1
      // Predicated region
      $region13: #{aggregated_attention.1} parent=11 // pred_check
        %p230 = pneg %p103
      $region14: #{aggregated_attention.1} parent=11 // pred_check_branch
        %232 = sbr.rel (%p230) target = $region16
      $region15: #{aggregated_attention.1} parent=11 // pred_region
        _
      $region16: #{aggregated_attention.1} parent=11 // pred_fallthru
        _
      // Predicated region
      $region17: #{aggregated_attention.1} parent=11 // pred_check
        %p233 = pneg %p124
      $region18: #{aggregated_attention.1} parent=11 // pred_check_branch
        %235 = sbr.rel (%p233) target = $region20
      $region19: #{aggregated_attention.1} parent=11 // pred_region
        _
      $region20: #{aggregated_attention.1} parent=11 // pred_fallthru
        _
      // Predicated region
      $region21: #{aggregated_attention.1} parent=11 // pred_check
        %p236 = pneg %p145
      $region22: #{aggregated_attention.1} parent=11 // pred_check_branch
        %238 = sbr.rel (%p236) target = $region24
      $region23: #{aggregated_attention.1} parent=11 // pred_region
        _
      $region24: #{aggregated_attention.1} parent=11 // pred_fallthru
        _
      // Predicated region
      $region25: #{aggregated_attention.1} parent=11 // pred_check
        %p239 = pneg %p166
      $region26: #{aggregated_attention.1} parent=11 // pred_check_branch
        %241 = sbr.rel (%p239) target = $region28
      $region27: #{aggregated_attention.1} parent=11 // pred_region
        _
      $region28: #{aggregated_attention.1} parent=11 // pred_fallthru
        _
      // Predicated region
      $region29: #{aggregated_attention.1} parent=11 // pred_check
        %p242 = pneg %p187
      $region30: #{aggregated_attention.1} parent=11 // pred_check_branch
        %244 = sbr.rel (%p242) target = $region32
      $region31: #{aggregated_attention.1} parent=11 // pred_region
        _
      $region32: #{aggregated_attention.1} parent=11 // pred_fallthru
        _
    $region12: #{aggregated_attention.1} parent=5 // pred_fallthru
      _
    %p245 = scmp.lt.s32.totalorder %s14, 2
    // Predicated region
    $region33: #{aggregated_attention.1} parent=5 // pred_check
      %p246 = pneg %p245
    $region34: #{aggregated_attention.1} parent=5 // pred_check_branch
      %248 = sbr.rel (%p246) target = $region36
    $region35: #{aggregated_attention.1} parent=5 // pred_region
      // Predicated region
      $region37: #{aggregated_attention.1} parent=35 // pred_check
        %p249 = pneg %p48
      $region38: #{aggregated_attention.1} parent=35 // pred_check_branch
        %251 = sbr.rel (%p249) target = $region40
      $region39: #{aggregated_attention.1} parent=35 // pred_region
        %s252 = smul.u32 2, %s22
        %p253 = scmp.lt.s32.totalorder %s21, 1
        %s254 = scalar_select %p253, %s21, 1
        %p255 = scmp.lt.s32.totalorder %s252, 1
        %s256 = scalar_select %p255, %s252, 1
        %s257 = smul.addr %s254, 2
        %s258 = sadd.s32 %s256, %s257
        %s259 = smul.addr %s258, 8
        %s260 = scalar_lea.vmem %s0, %s259
        %s261 = smul.u32 2, %s22
      $region40: #{aggregated_attention.1} parent=35 // pred_fallthru
        _
      // Predicated region
      $region41: #{aggregated_attention.1} parent=35 // pred_check
        %p262 = pneg %p76
      $region42: #{aggregated_attention.1} parent=35 // pred_check_branch
        %264 = sbr.rel (%p262) target = $region44
      $region43: #{aggregated_attention.1} parent=35 // pred_region
        %s265 = smul.u32 2, %s22
        %p266 = scmp.lt.s32.totalorder %s21, 1
        %s267 = scalar_select %p266, %s21, 1
        %p268 = scmp.lt.s32.totalorder %s265, 1
        %s269 = scalar_select %p268, %s265, 1
        %s270 = smul.addr %s267, 2
        %s271 = sadd.s32 %s269, %s270
        %s272 = smul.addr %s271, 8
        %s273 = scalar_lea.vmem %s1, %s272
        %s274 = smul.u32 2, %s22
      $region44: #{aggregated_attention.1} parent=35 // pred_fallthru
        _
    $region36: #{aggregated_attention.1} parent=5 // pred_fallthru
      _
    %p275 = scmp.le.s32.totalorder 1, %s14
    %p276 = scmp.lt.s32.totalorder %s14, 3
    %p277 = pnand %p275, %p276
    %p278 = pneg %p277
    // Predicated region
    $region45: #{aggregated_attention.1} parent=5 // pred_check
      _
    $region46: #{aggregated_attention.1} parent=5 // pred_check_branch
      %280 = sbr.rel (%p277) target = $region48
    $region47: #{aggregated_attention.1} parent=5 // pred_region
      %s281 = ssub.s32 %s14, 1
      %s282 = smul.u32 2, %s24
      %p283 = scmp.lt.s32.totalorder %s23, 1
      %s284 = scalar_select %p283, %s23, 1
      %p285 = scmp.lt.s32.totalorder %s282, 1
      %s286 = scalar_select %p285, %s282, 1
      %s287 = smul.addr %s284, 2
      %s288 = sadd.s32 %s286, %s287
      %s289 = smul.addr %s288, 8
      %s290 = scalar_lea.vmem %s0, %s289
      %p291 = pneg %p54
      %p292 = pneg %p51
      %s293 = smul.u32 2, %s24
      %p294 = scmp.lt.s32.totalorder %s23, 1
      %s295 = scalar_select %p294, %s23, 1
      %p296 = scmp.lt.s32.totalorder %s293, 1
      %s297 = scalar_select %p296, %s293, 1
      %s298 = smul.addr %s295, 2
      %s299 = sadd.s32 %s297, %s298
      %s300 = smul.addr %s299, 8
      %s301 = scalar_lea.vmem %s1, %s300
      %p302 = pneg %p82
      %p303 = pneg %p79
      %p304 = pneg %p103
      %p305 = pneg %p100
      %p306 = pneg %p124
      %p307 = pneg %p121
      %p308 = pneg %p145
      %p309 = pneg %p142
      %p310 = pneg %p166
      %p311 = pneg %p163
      %p312 = pneg %p187
      %p313 = pneg %p184
      %p314 = pneg %p215
      %p315 = pneg %p212
      %s316 = smul.u32 2, %s24
      %p317 = scmp.lt.s32.totalorder %s23, 1
      %s318 = scalar_select %p317, %s23, 1
      %p319 = scmp.lt.s32.totalorder %s316, 1
      %s320 = scalar_select %p319, %s316, 1
      %s321 = smul.addr %s318, 2
      %s322 = sadd.s32 %s320, %s321
      %s323 = smul.addr %s322, 8
      %s324 = scalar_lea.vmem %s7, %s323
      %s325 = smul.u32 2, %s24
      %p326 = scmp.lt.s32.totalorder %s23, 1
      %s327 = scalar_select %p326, %s23, 1
      %p328 = scmp.lt.s32.totalorder %s325, 1
      %s329 = scalar_select %p328, %s325, 1
      %s330 = smul.addr %s327, 2
      %s331 = sadd.s32 %s329, %s330
      %s332 = smul.addr %s331, 8
      %s333 = scalar_lea.vmem %s0, %s332
      %s334 = smul.u32 2, %s24
      %s335 = smul.u32 2, %s24
      %p336 = scmp.lt.s32.totalorder %s23, 1
      %s337 = scalar_select %p336, %s23, 1
      %p338 = scmp.lt.s32.totalorder %s335, 1
      %s339 = scalar_select %p338, %s335, 1
      %s340 = smul.addr %s337, 2
      %s341 = sadd.s32 %s339, %s340
      %s342 = smul.addr %s341, 8
      %s343 = scalar_lea.vmem %s1, %s342
      %s344 = smul.u32 2, %s24
      %s345 = smul.u32 2, %s24
      %p346 = scmp.lt.s32.totalorder %s23, 1
      %s347 = scalar_select %p346, %s23, 1
      %p348 = scmp.lt.s32.totalorder %s345, 1
      %s349 = scalar_select %p348, %s345, 1
      %s350 = smul.addr %s347, 2
      %s351 = sadd.s32 %s349, %s350
      %s352 = smul.addr %s351, 8
      %s353 = scalar_lea.vmem %s7, %s352
      %s354 = smul.u32 2, %s24
      %v355 = vld [vmem:[%s333] sm:$0xff]
      %v356 = vld [vmem:[%s333 + $0x8] sm:$0xff]
      %v357 = vld [vmem:[%s343] sm:$0xff]
      %v358 = vld [vmem:[%s343 + $0x8] sm:$0xff]
      %v359 = vld [vmem:[%s2] sm:$0xf]
      %v360 = vld [vmem:[%s3] sm:$0xf]
      %vm361 = vcmask 64512
      %v363 = vsel %vm361, %v360, 0
      %365 = vmatprep.subr.mxu0 %v358
      %366 = vmatpush1.msra.mxu0 %v357
      %367 = vmatprep.subr.mxu0 0.0
      %368 = vmatpush1.msra.mxu0 0.0
      %369 = vmatprep.subr.mxu0 0.0
      %370 = vmatpush1.msra.mxu0 0.0
      %371 = vmatprep.subr.mxu0 0.0
      %372 = vmatpush1.msra.mxu0 0.0
      %373 = vmatprep.subr.mxu0 0.0
      %374 = vmatpush1.msra.mxu0 0.0
      %375 = vmatprep.subr.mxu0 0.0
      %376 = vmatpush1.msra.mxu0 0.0
      %377 = vmatprep.subr.mxu0 0.0
      %378 = vmatpush1.msra.mxu0 0.0
      %379 = vmatprep.subr.mxu0 0.0
      %380 = vmatpush1.msra.mxu0 0.0
      %381 = vmatprep.subr.mxu0 0.0
      %382 = vmatpush1.msra.mxu0 0.0
      %383 = vmatprep.subr.mxu0 0.0
      %384 = vmatpush1.msra.mxu0 0.0
      %385 = vmatprep.subr.mxu0 0.0
      %386 = vmatpush1.msra.mxu0 0.0
      %387 = vmatprep.subr.mxu0 0.0
      %388 = vmatpush1.msra.mxu0 0.0
      %389 = vmatprep.subr.mxu0 0.0
      %390 = vmatpush1.msra.mxu0 0.0
      %391 = vmatprep.subr.mxu0 0.0
      %392 = vmatpush1.msra.mxu0 0.0
      %393 = vmatprep.subr.mxu0 0.0
      %394 = vmatpush1.msra.mxu0 0.0
      %395 = vmatprep.subr.mxu0 0.0
      %396 = vmatpush1.msra.mxu0 0.0
      %397 = vmatprep.subr.mxu0 0.0
      %398 = vmatpush1.msra.mxu0 0.0
      %399 = vmatprep.subr.mxu0 0.0
      %400 = vmatpush1.msra.mxu0 0.0
      %401 = vmatprep.subr.mxu0 0.0
      %402 = vmatpush1.msra.mxu0 0.0
      %403 = vmatprep.subr.mxu0 0.0
      %404 = vmatpush1.msra.mxu0 0.0
      %405 = vmatprep.subr.mxu0 0.0
      %406 = vmatpush1.msra.mxu0 0.0
      %407 = vmatprep.subr.mxu0 0.0
      %408 = vmatpush1.msra.mxu0 0.0
      %409 = vmatprep.subr.mxu0 0.0
      %410 = vmatpush1.msra.mxu0 0.0
      %411 = vmatprep.subr.mxu0 0.0
      %412 = vmatpush1.msra.mxu0 0.0
      %413 = vmatprep.subr.mxu0 0.0
      %414 = vmatpush1.msra.mxu0 0.0
      %415 = vmatprep.subr.mxu0 0.0
      %416 = vmatpush1.msra.mxu0 0.0
      %417 = vmatprep.subr.mxu0 0.0
      %418 = vmatpush1.msra.mxu0 0.0
      %419 = vmatprep.subr.mxu0 0.0
      %420 = vmatpush1.msra.mxu0 0.0
      %421 = vmatprep.subr.mxu0 0.0
      %422 = vmatpush1.msra.mxu0 0.0
      %423 = vmatprep.subr.mxu0 0.0
      %424 = vmatpush1.msra.mxu0 0.0
      %425 = vmatprep.subr.mxu0 0.0
      %426 = vmatpush1.msra.mxu0 0.0
      %427 = vmatprep.subr.mxu0 0.0
      %428 = vmatpush1.msra.mxu0 0.0
      %429 = vmatprep.mubr.f32.mxu0 0.0
      %430 = vmatmul.mubr.f32.gmra.mrb[0].mxu0 %v363
      %v431 = vpop.f32.mrb[0].mxu0
      %v432 = vadd.f32 0.0, %v431
      %v433 = vpop.f32.mrb[0].mxu0
      %v434 = vadd.f32 0.0, %v433
      %435 = vdwg.mxu0
      %v437 = vsel %vm361, %v359, 0
      %439 = vmatprep.subr.mxu0 %v356
      %440 = vmatpush1.msra.mxu0 %v355
      %441 = vmatprep.subr.mxu0 0.0
      %442 = vmatpush1.msra.mxu0 0.0
      %443 = vmatprep.subr.mxu0 0.0
      %444 = vmatpush1.msra.mxu0 0.0
      %445 = vmatprep.subr.mxu0 0.0
      %446 = vmatpush1.msra.mxu0 0.0
      %447 = vmatprep.subr.mxu0 0.0
      %448 = vmatpush1.msra.mxu0 0.0
      %449 = vmatprep.subr.mxu0 0.0
      %450 = vmatpush1.msra.mxu0 0.0
      %451 = vmatprep.subr.mxu0 0.0
      %452 = vmatpush1.msra.mxu0 0.0
      %453 = vmatprep.subr.mxu0 0.0
      %454 = vmatpush1.msra.mxu0 0.0
      %455 = vmatprep.subr.mxu0 0.0
      %456 = vmatpush1.msra.mxu0 0.0
      %457 = vmatprep.subr.mxu0 0.0
      %458 = vmatpush1.msra.mxu0 0.0
      %459 = vmatprep.subr.mxu0 0.0
      %460 = vmatpush1.msra.mxu0 0.0
      %461 = vmatprep.subr.mxu0 0.0
      %462 = vmatpush1.msra.mxu0 0.0
      %463 = vmatprep.subr.mxu0 0.0
      %464 = vmatpush1.msra.mxu0 0.0
      %465 = vmatprep.subr.mxu0 0.0
      %466 = vmatpush1.msra.mxu0 0.0
      %467 = vmatprep.subr.mxu0 0.0
      %468 = vmatpush1.msra.mxu0 0.0
      %469 = vmatprep.subr.mxu0 0.0
      %470 = vmatpush1.msra.mxu0 0.0
      %471 = vmatprep.subr.mxu0 0.0
      %472 = vmatpush1.msra.mxu0 0.0
      %473 = vmatprep.subr.mxu0 0.0
      %474 = vmatpush1.msra.mxu0 0.0
      %475 = vmatprep.subr.mxu0 0.0
      %476 = vmatpush1.msra.mxu0 0.0
      %477 = vmatprep.subr.mxu0 0.0
      %478 = vmatpush1.msra.mxu0 0.0
      %479 = vmatprep.subr.mxu0 0.0
      %480 = vmatpush1.msra.mxu0 0.0
      %481 = vmatprep.subr.mxu0 0.0
      %482 = vmatpush1.msra.mxu0 0.0
      %483 = vmatprep.subr.mxu0 0.0
      %484 = vmatpush1.msra.mxu0 0.0
      %485 = vmatprep.subr.mxu0 0.0
      %486 = vmatpush1.msra.mxu0 0.0
      %487 = vmatprep.subr.mxu0 0.0
      %488 = vmatpush1.msra.mxu0 0.0
      %489 = vmatprep.subr.mxu0 0.0
      %490 = vmatpush1.msra.mxu0 0.0
      %491 = vmatprep.subr.mxu0 0.0
      %492 = vmatpush1.msra.mxu0 0.0
      %493 = vmatprep.subr.mxu0 0.0
      %494 = vmatpush1.msra.mxu0 0.0
      %495 = vmatprep.subr.mxu0 0.0
      %496 = vmatpush1.msra.mxu0 0.0
      %497 = vmatprep.subr.mxu0 0.0
      %498 = vmatpush1.msra.mxu0 0.0
      %499 = vmatprep.subr.mxu0 0.0
      %500 = vmatpush1.msra.mxu0 0.0
      %501 = vmatprep.subr.mxu0 0.0
      %502 = vmatpush1.msra.mxu0 0.0
      %503 = vmatprep.mubr.f32.mxu0 0.0
      %504 = vmatmul.mubr.f32.gmra.mrb[0].mxu0 %v437
      %v505 = vpop.f32.mrb[0].mxu0
      %v506 = vadd.f32 %v432, %v505
      %v507 = vpop.f32.mrb[0].mxu0
      %v508 = vadd.f32 %v434, %v507
      %509 = vdwg.mxu0
      %v510 = vld [vmem:[%s4] sm:$0xf]
      %512 = vset.pattern.permute.xlu0 0
      %513 = vperm.xlu0 %512, %v510
      %v514 = vpop.permute.xlu0 %513
      %v516 = vadd.f32 %v506, %v514
      %v517 = vadd.f32 %v508, %v514
      %v518 = vmax.f32 %v516, 0.0
      %v519 = vmax.f32 %v517, 0.0
      %v520 = vld [vmem:[%s5] sm:$0xf]
      %522 = vset.pattern.permute.xlu0 0
      %523 = vperm.xlu0 %522, %v520
      %v524 = vpop.permute.xlu0 %523
      %v526 = vmul.f32 %v518, %v524
      %v527 = vmul.f32 %v519, %v524
      %vm528 = vcmask 1043456
      %v529 = vsel %vm528, %v526, 0.0
      %v530 = vrot.slane %v529, 4
      %v531 = vadd.f32 %v529, %v530
      %v532 = vrot.slane %v531, 2
      %v533 = vadd.f32 %v531, %v532
      %v534 = vrot.slane %v533, 1
      %v535 = vadd.f32 %v533, %v534
      %v536 = vsel %vm528, %v527, 0.0
      %v537 = vrot.slane %v536, 4
      %v538 = vadd.f32 %v536, %v537
      %v539 = vrot.slane %v538, 2
      %v540 = vadd.f32 %v538, %v539
      %v541 = vrot.slane %v540, 1
      %v542 = vadd.f32 %v540, %v541
      %s543 = sld [smem:[#allocation2]]
      %v544 = vstv %s543
      %v545 = vadd.f32 %v535, %v544
      %v546 = vadd.f32 %v542, %v544
      %v547 = vxor.u32 %v545, 2147483648
      %v548 = vxor.u32 %v546, 2147483648
      %v549 = vmul.f32 %v547, 1.442695
      %v550 = vpow.pop %v549
      %v551 = vmul.f32 %v548, 1.442695
      %v552 = vpow.pop %v551
      %v553 = vadd.f32 %v550, 1.0
      %v554 = vadd.f32 %v552, 1.0
      %v555 = vrcp.pop %v553
      %v556 = vmul.f32 1.0, %v555
      %v557 = vrcp.pop %v554
      %v558 = vmul.f32 1.0, %v557
      %v559 = vmul.f32 %v357, %v556
      %v560 = vmul.f32 %v358, %v558
      %561 = vst [vmem:[%s353] sm:$0xff] %v559
      %562 = vst [vmem:[%s353 + $0x8] sm:$0xff] %v560
      %s563 = smul.u32 2, %s24
      %p564 = scmp.lt.s32.totalorder %s23, 1
      %s565 = scalar_select %p564, %s23, 1
      %p566 = scmp.lt.s32.totalorder %s563, 1
      %s567 = scalar_select %p566, %s563, 1
      %s568 = smul.addr %s565, 2
      %s569 = sadd.s32 %s567, %s568
      %s570 = smul.addr %s569, 8
      %s571 = scalar_lea.vmem %s7, %s570
      // Predicated region
      $region49: #{aggregated_attention.1} parent=47 // pred_check
        %p572 = pneg %p212
      $region50: #{aggregated_attention.1} parent=47 // pred_check_branch
        %574 = sbr.rel (%p572) target = $region52
      $region51: #{aggregated_attention.1} parent=47 // pred_region
        %s575 = smul.u32 2, %s24
      $region52: #{aggregated_attention.1} parent=47 // pred_fallthru
        _
    $region48: #{aggregated_attention.1} parent=5 // pred_fallthru
      _
    %p576 = scmp.le.s32.totalorder 2, %s14
    // Predicated region
    $region53: #{aggregated_attention.1} parent=5 // pred_check
      %p577 = pneg %p576
    $region54: #{aggregated_attention.1} parent=5 // pred_check_branch
      %579 = sbr.rel (%p577) target = $region56
    $region55: #{aggregated_attention.1} parent=5 // pred_region
      %s580 = ssub.s32 %s14, 2
      // Predicated region
      $region57: #{aggregated_attention.1} parent=55 // pred_check
        %p581 = pneg %p218
      $region58: #{aggregated_attention.1} parent=55 // pred_check_branch
        %583 = sbr.rel (%p581) target = $region60
      $region59: #{aggregated_attention.1} parent=55 // pred_region
        %s584 = smul.u32 2, %s26
        %p585 = scmp.lt.s32.totalorder %s25, 1
        %s586 = scalar_select %p585, %s25, 1
        %p587 = scmp.lt.s32.totalorder %s584, 1
        %s588 = scalar_select %p587, %s584, 1
        %s589 = smul.addr %s586, 2
        %s590 = sadd.s32 %s588, %s589
        %s591 = smul.addr %s590, 8
        %s592 = scalar_lea.vmem %s7, %s591
      $region60: #{aggregated_attention.1} parent=55 // pred_fallthru
        _
    $region56: #{aggregated_attention.1} parent=5 // pred_fallthru
      _
  $region6: #{aggregated_attention.1} parent=0 // loop_footer
    %s18 = sadd.s32 1, %s14
  $region7: #{aggregated_attention.1} parent=0 // loop_footer_branch
    %13 = sbr.rel target = $region3
  $region8: #{aggregated_attention.1} parent=0 // loop_exit
    _

</llo_original>
